<compile_context>
chip_gen: v7x
topology: tpu7x:2x2x1
jax: 0.10.0
libtpu: 0.0.40
codegen_flags: <defaults>
</compile_context>

<pallas_src>
import functools

import jax
import jax.numpy as jnp
from jax import lax
from jax.experimental import pallas as pl
from jax.experimental.pallas import tpu as pltpu


# -----------------------------------------------------------------------------
# One-time probe of pltpu.roll's rotation direction.  The fused im2col relies
# on the exact wrap direction; a sign error would silently mirror the conv
# offsets, so we measure it on-device once instead of assuming.
# numpy semantics:  roll(x, 1)[..., 0] == x[..., -1].
# -----------------------------------------------------------------------------
@functools.lru_cache(maxsize=None)
def _roll_is_numpy_style() -> bool:
    def _probe(x_ref, o_ref):
        o_ref[...] = pltpu.roll(x_ref[...], shift=1, axis=1)

    x = jnp.tile(jnp.arange(128, dtype=jnp.float32)[None, :], (8, 1))
    y = pl.pallas_call(
        _probe, out_shape=jax.ShapeDtypeStruct((8, 128), jnp.float32))(x)
    # 127 -> numpy ("roll right") semantics; 1 -> opposite ("roll left").
    return float(jax.device_get(y[0, 0])) != 1.0


# -----------------------------------------------------------------------------
# Kernel: one grid step processes `tb` batch samples.
#   arc_ref  : SMEM int32 [bs_pad]            (scalar prefetch: branch per sample)
#   x_ref    : VMEM f32   [tb, C_in, HW]      flattened NCHW input block
#   mask_ref : VMEM f32   [k*k, HW]           border-validity mask per (kh, kw)
#   w_ref    : VMEM bf16  [nb, C_out, K_dot]  ALL branch weights (resident)
#   b_ref    : VMEM f32   [nb, C_out, 1]      ALL branch biases  (resident)
#   o_ref    : VMEM f32   [tb, C_out, HW]
# -----------------------------------------------------------------------------
def mixed_layer_kernel(arc_ref, x_ref, mask_ref, w_ref, b_ref, o_ref, *,
                       shifts, c_in, tb, pad_rows):
    hw = x_ref.shape[-1]
    xb = x_ref[...].reshape(tb * c_in, hw)        # [tb*c_in, hw] f32 (layout no-op)

    # ---- fused im2col, vectorized across the whole tile ---------------------
    taps = []
    for j, s in enumerate(shifts):                # static unroll over k*k taps
        if s == 0:                                # center tap: identity, full mask
            xs = xb
        else:
            xs = pltpu.roll(xb, shift=s, axis=1)  # XLU lane rotation (free slot)
            xs = xs * mask_ref[j:j + 1, :]        # f32 border mask: 1 mul / tap / tile
        taps.append(xs.astype(jnp.bfloat16))      # bf16 patches; f32 acc in the dot

    pad_blk = jnp.zeros((pad_rows, hw), jnp.bfloat16) if pad_rows else None

    step = pl.program_id(0)
    for smp in range(tb):                         # static unroll over tile samples
        lo = smp * c_in
        blocks = [t[lo:lo + c_in, :] for t in taps]
        if pad_blk is not None:
            blocks.append(pad_blk)
        # In-register patch assembly: no scratch round-trip, no partial stores.
        patch = jnp.concatenate(blocks, axis=0)   # [k_dot, hw] bf16
        arc = arc_ref[step * tb + smp]            # per-sample branch id (SMEM scalar)
        acc = jnp.dot(w_ref[arc], patch,          # [c_out,k_dot] @ [k_dot,hw] on MXU
                      preferred_element_type=jnp.float32)
        # Lane-dense [c_out, hw] store (hw multiple of 128 here -> unmasked vst).
        o_ref[smp] = (acc + b_ref[arc]).astype(o_ref.dtype)


@functools.partial(jax.jit, static_argnames=("kmax", "roll_numpy"))
def _mixed_layer_forward(x_nchw, sample_arc, weights, biases, *, kmax, roll_numpy):
    bs, c_in, h, w = x_nchw.shape
    num_branch, c_out = biases.shape
    hw = h * w
    kk = kmax * kmax
    k_feat = c_in * kk
    k_dot = ((k_feat + 7) // 8) * 8               # align contraction rows to 8
    pad_rows = k_dot - k_feat

    # Tile size: fill the 8 f32 sublanes per tap op when c_in is small, but keep
    # >= 2 grid steps (v7x megacore + DMA/compute pipelining) and bound the
    # register pressure of in-register patch assembly.  No divisibility req.
    tb = max(1, min(8 // max(1, c_in), bs // 2, 2))
    grid = (bs + tb - 1) // tb
    bs_pad = grid * tb

    # ---- wrapper glue (layout only; the 25x patch tensor never hits HBM) ----
    x_flat = x_nchw.reshape(bs, c_in, hw).astype(jnp.float32)
    arc = sample_arc.astype(jnp.int32)
    if bs_pad != bs:
        x_flat = jnp.pad(x_flat, ((0, bs_pad - bs), (0, 0), (0, 0)))
        arc = jnp.pad(arc, (0, bs_pad - bs))      # branch 0 for the discarded tail

    # Branch weights: feature order must match patch rows: (kh, kw, c_in).
    w_flat = jnp.transpose(weights, (0, 1, 3, 4, 2)).reshape(
        num_branch, c_out, k_feat)
    w_flat = jnp.pad(w_flat, ((0, 0), (0, 0), (0, pad_rows))).astype(jnp.bfloat16)
    b_flat = biases.reshape(num_branch, c_out, 1).astype(jnp.float32)

    # Border-validity masks and lane-roll amounts per tap.
    # NOTE: correct for any H*W; HW a multiple of 128 (true here) additionally
    # keeps all output stores unmasked / lane-dense.
    pad = kmax // 2
    rr = jnp.arange(hw, dtype=jnp.int32) // w
    cc = jnp.arange(hw, dtype=jnp.int32) % w
    mask_rows, shifts = [], []
    for kh in range(kmax):
        for kw_ in range(kmax):
            dr, dc = kh - pad, kw_ - pad
            mask_rows.append((rr + dr >= 0) & (rr + dr < h)
                             & (cc + dc >= 0) & (cc + dc < w))
            s = dr * w + dc                       # desired left-shift (may be < 0)
            shifts.append(((-s) % hw) if roll_numpy else (s % hw))
    masks = jnp.stack(mask_rows, axis=0).astype(jnp.float32)     # [k*k, HW]

    kernel = functools.partial(mixed_layer_kernel, shifts=tuple(shifts),
                               c_in=c_in, tb=tb, pad_rows=pad_rows)

    out = pl.pallas_call(
        kernel,
        out_shape=jax.ShapeDtypeStruct((bs_pad, c_out, hw), jnp.float32),
        grid_spec=pltpu.PrefetchScalarGridSpec(
            num_scalar_prefetch=1,
            grid=(grid,),
            in_specs=[
                pl.BlockSpec((tb, c_in, hw), lambda i, arc: (i, 0, 0)),
                pl.BlockSpec((kk, hw), lambda i, arc: (0, 0)),
                pl.BlockSpec((num_branch, c_out, k_dot),
                             lambda i, arc: (0, 0, 0)),
                pl.BlockSpec((num_branch, c_out, 1),
                             lambda i, arc: (0, 0, 0)),
            ],
            out_specs=pl.BlockSpec((tb, c_out, hw), lambda i, arc: (i, 0, 0)),
        ),
        compiler_params=pltpu.CompilerParams(
            dimension_semantics=("parallel",),
            vmem_limit_bytes=32 * 1024 * 1024,    # explicit budget; fits v7x 64 MiB
        ),
    )(arc, x_flat, masks, w_flat, b_flat)

    # [bs, C_out, HW] -> NCHW is a pure reshape (lane dim already spatial).
    return out[:bs].reshape(bs, c_out, h, w)


def mixed_layer_forward(x_nchw, sample_arc, weights, biases, kmax):
    """MixedLayer forward: out[b] = Conv2d_{sample_arc[b]}(x)[b] (SAME, stride 1)."""
    return _mixed_layer_forward(x_nchw, sample_arc, weights, biases,
                                kmax=kmax, roll_numpy=_roll_is_numpy_style())


# -----------------------------------------------------------------------------
# Deterministic parameter construction (synthetic, no checkpoint).
# -----------------------------------------------------------------------------
def build_branch_params(key, in_channels, out_channels, kernel_sizes):
    kmax = max(kernel_sizes)
    # Centered embedding of k x k into kmax x kmax is exact SAME-conv only if
    # parities match (true for 1/3/5) — assert the latent assumption.
    assert all((kmax - k) % 2 == 0 for k in kernel_sizes)
    weights, biases = [], []
    for i, k in enumerate(kernel_sizes):
        kw_key, kb_key = jax.random.split(jax.random.fold_in(key, i))
        fan_in = in_channels * k * k
        bound = 1.0 / jnp.sqrt(fan_in)
        w_k = jax.random.uniform(
            kw_key, (out_channels, in_channels, k, k),
            minval=-bound, maxval=bound, dtype=jnp.float32)
        b_k = jax.random.uniform(
            kb_key, (out_channels,), minval=-bound, maxval=bound,
            dtype=jnp.float32)
        p = (kmax - k) // 2
        weights.append(jnp.pad(w_k, ((0, 0), (0, 0), (p, p), (p, p))))
        biases.append(b_k)
    return jnp.stack(weights), jnp.stack(biases), kmax


def reference_forward(x_nchw, sample_arc, weights, biases):
    """Plain-JAX reference mimicking the PyTorch one-hot-sum formulation."""
    num_branch = weights.shape[0]
    branch_outs = []
    for j in range(num_branch):
        y = lax.conv_general_dilated(
            x_nchw, weights[j], window_strides=(1, 1), padding="SAME",
            dimension_numbers=("NCHW", "OIHW", "NCHW"))
        y = y + biases[j][None, :, None, None]
        branch_outs.append(y)
    stacked = jnp.stack(branch_outs, axis=1)          # [bs, nb, C, H, W]
    onehot = jax.nn.one_hot(sample_arc, num_branch, dtype=jnp.float32)
    return (onehot[:, :, None, None, None] * stacked).sum(axis=1)


if __name__ == "__main__":
    key = jax.random.PRNGKey(0)
    k_x, k_p = jax.random.split(key)

    bs, c_in, c_out, h = 2, 4, 8, 16
    kernel_sizes = (1, 3, 5)                          # the mixed-op branches

    x = jax.random.normal(k_x, (bs, c_in, h, h), dtype=jnp.float32)
    sample_arc = jnp.array([1, 2], dtype=jnp.int32)   # per-sample branch choice

    weights, biases, kmax = build_branch_params(k_p, c_in, c_out, kernel_sizes)

    out = mixed_layer_forward(x, sample_arc, weights, biases, kmax)
    out = jax.block_until_ready(out)

    # Reference on bf16-rounded operands (kernel feeds the MXU in bf16 with
    # f32 accumulation), so only accumulation-order noise remains.
    x_r = x.astype(jnp.bfloat16).astype(jnp.float32)
    w_r = weights.astype(jnp.bfloat16).astype(jnp.float32)
    ref = jax.block_until_ready(reference_forward(x_r, sample_arc, w_r, biases))

    assert out.shape == (bs, c_out, h, h)
    max_err = float(jnp.max(jnp.abs(out - ref)))
    assert jnp.allclose(out, ref, atol=1e-2, rtol=1e-2), max_err

    print("KERNEL_OK")
</pallas_src>

<mosaic_0001>
module attributes {stable_mosaic.version = 11 : i64} {
  func.func @_probe(%arg0: memref<8x128xf32, #tpu.memory_space<vmem>>, %arg1: memref<8x128xf32, #tpu.memory_space<vmem>>) attributes {dimension_semantics = [], scalar_prefetch = 0 : i64, scratch_operands = 0 : i64, tpu.core_type = #tpu.core_type<tc>} {
    %c0 = arith.constant 0 : index
    %c0_0 = arith.constant 0 : index
    %0 = vector.load %arg0[%c0, %c0_0] : memref<8x128xf32, #tpu.memory_space<vmem>>, vector<8x128xf32>
    %c1_i32 = arith.constant 1 : i32
    %1 = tpu.dynamic_rotate %0 by %c1_i32 dim 1 : vector<8x128xf32>, i32 -> vector<8x128xf32>
    %c0_1 = arith.constant 0 : index
    %c0_2 = arith.constant 0 : index
    %2 = vector.load %arg1[%c0_1, %c0_2] : memref<8x128xf32, #tpu.memory_space<vmem>>, vector<8x128xf32>
    tpu.vector_store %arg1[%c0_1, %c0_2], %1 {strides = array<i32>} : memref<8x128xf32, #tpu.memory_space<vmem>>, vector<8x128xf32>,
    return
  }
}

</mosaic_0001>

<llo_original>
// kernel: tpu_custom_call.1
$region0: #{tpu_custom_call.1}
  #allocation0 [shape = 'u32[]', space=smem, size = 0x4, offset = 0x4, fixed_abs, tag = 'smem constant byte address 0x4 - core index']
  #allocation1 [shape = 'u32[144,128]{1,0:T(1,128)}', space=vmem, size = 0x12000, scoped, tag = 'internal scratch']
  %s0 = inlined_call_operand.hbm [shape: f32[8,128], index: 0, kind: input, shape index: {}]
  %s1 = inlined_call_operand.hbm [shape: f32[8,128], index: 1, kind: output, shape index: {}]
  %s2 = sld [smem:[#allocation0]]
  $region18: #{tpu_custom_call.1} parent=0
    _
  %s4 = ssub.s32 1, %s2
  %s5 = scalar_select 0, %s4, %s2
  $region1: #{tpu_custom_call.1} parent=0
    #allocation2 [shape = 'u8[4096]{0}', space=vmem, size = 0x1000, scoped, tag = 'input window, operand 0, single buffered']
    #allocation3 [shape = 's32[1]{0}', space=sflag, size = 0x4, scoped, tag = 'scoped memory for tpu_custom_call.1']
    #allocation4 [shape = 's32[1]{0}', space=sflag, size = 0x4, scoped, tag = 'scoped memory for tpu_custom_call.1']
    #allocation5 [shape = 'u8[4096]{0}', space=vmem, size = 0x1000, scoped, tag = 'output window, operand 0, single buffered']
    %6 = vsyncpa [#allocation3], 0
    %7 = vsyncpa [#allocation4], 0
    // Predicated region
    $region2: #{tpu_custom_call.1} parent=1 // pred_check
      _
    $region3: #{tpu_custom_call.1} parent=1 // pred_check_branch
      %9 = sbr.rel (0) target = $region5
    $region4: #{tpu_custom_call.1} parent=1 // pred_region
      %s11 = ssub.s32 128, 128
      %12 = vsyncadd [#allocation3], %s11
      %s14 = sshll.u32 [#allocation2], 4
      %s15 = int_to_ptr.vmem [resolvable:$true] %s14
      %17 = dma.hbm_to_vmem [thread:$0]  %s0, 128, %s15, [#allocation3]
    $region5: #{tpu_custom_call.1} parent=1 // pred_fallthru
      _
    // Predicated region
    $region6: #{tpu_custom_call.1} parent=1 // pred_check
      _
    $region7: #{tpu_custom_call.1} parent=1 // pred_check_branch
      %19 = sbr.rel (0) target = $region9
    $region8: #{tpu_custom_call.1} parent=1 // pred_region
      %20 = dma.done [#allocation3], 128
    $region9: #{tpu_custom_call.1} parent=1 // pred_fallthru
      _
    %v21 = vld [vmem:[#allocation2] sm:$0xff]
    %22 = vrot.lane.b32.xlu0 %v21, 1
    %v23 = vpop.permute.xlu0 %22
    %24 = vst [vmem:[#allocation5] sm:$0xff] %v23
    // Predicated region
    $region10: #{tpu_custom_call.1} parent=1 // pred_check
      _
    $region11: #{tpu_custom_call.1} parent=1 // pred_check_branch
      %26 = sbr.rel (0) target = $region13
    $region12: #{tpu_custom_call.1} parent=1 // pred_region
      %s28 = ssub.s32 128, 128
      %29 = vsyncadd [#allocation4], %s28
      %s31 = sshll.u32 [#allocation5], 4
      %s32 = int_to_ptr.vmem [resolvable:$true] %s31
      %34 = dma.vmem_to_hbm [thread:$0]  %s32, 128, %s1, [#allocation4]
    $region13: #{tpu_custom_call.1} parent=1 // pred_fallthru
      _
    // Predicated region
    $region14: #{tpu_custom_call.1} parent=1 // pred_check
      _
    $region15: #{tpu_custom_call.1} parent=1 // pred_check_branch
      %36 = sbr.rel (0) target = $region17
    $region16: #{tpu_custom_call.1} parent=1 // pred_region
      %37 = dma.done [#allocation4], 128
    $region17: #{tpu_custom_call.1} parent=1 // pred_fallthru
      _
    %38 = vsyncpa [#allocation3], 1
    %39 = vsyncpa [#allocation4], 1

</llo_original>
